<compile_context>
chip_gen: v5e
topology: v5e:2x2
jax: 0.10.0
libtpu: 0.0.40
codegen_flags: <defaults>
</compile_context>

<pallas_src>
import functools

import jax
import jax.numpy as jnp
from jax import lax
from jax.experimental import pallas as pl
from jax.experimental.pallas import tpu as pltpu


def _pick_row_tile(n, f_in, out_pad, vmem_budget_bytes=24 << 20):
    """Largest sublane-aligned row tile that divides N and fits the VMEM budget."""
    if n <= 128:
        return n
    # Bytes that do not scale with the row tile (double-buffered x block).
    fixed = 2 * n * f_in * 4
    candidates = [t for t in (512, 256, 128, 64, 32, 16, 8) if n % t == 0]
    if not candidates:
        return n  # TODO(synk): odd N falls back to a single full-row block.
    for t in candidates:
        # ~2x-buffered adj stripe + L + P_{k-1} + P_k + output/acc stripes.
        if fixed + t * (6 * n + 3 * out_pad) * 4 <= vmem_budget_bytes:
            return t
    return candidates[-1]


def _legendre_gcn_kernel(adj_ref, x_ref, drow_ref, dcol_ref, w_ref, b_ref, o_ref,
                         *, K, compute_dtype):
    TM, N = adj_ref.shape[1], adj_ref.shape[2]

    adj = adj_ref[0]                       # (TM, N) f32 stripe of adjacency
    x = x_ref[0]                           # (N, F_in) f32, resident per batch
    d_row = drow_ref[0]                    # (TM, 1)  D^-1/2 for this stripe's rows
    d_col = dcol_ref[0]                    # (1, N)   D^-1/2 for all columns

    # Identity stripe from iotas (no host-side eye, no ones(N,N)).
    row_off = pl.program_id(1) * TM
    rows = lax.broadcasted_iota(jnp.int32, (TM, N), 0) + row_off
    cols = lax.broadcasted_iota(jnp.int32, (TM, N), 1)
    eye = (rows == cols).astype(adj.dtype)

    # L stripe of D^-1/2 (A + I) D^-1/2, fused (no live A_hat temporary).
    L = (d_row * (adj + eye)) * d_col      # (TM, N) f32

    x_mm = x.astype(compute_dtype)
    F_in = x.shape[1]
    out_pad = o_ref.shape[-1]

    # k = 0: P_0 is all-ones  =>  P_0 @ x == broadcast of sum_j x[j]  (no matmul
    # against an (N, N) ones matrix, no ones materialization).
    x0 = jnp.broadcast_to(jnp.sum(x, axis=0, keepdims=True), (TM, F_in))
    acc = jnp.dot(x0.astype(compute_dtype), w_ref[0].astype(compute_dtype),
                  preferred_element_type=jnp.float32)          # (TM, out_pad) f32

    # k >= 1: elementwise Legendre recurrence on the stripe, fused with the
    # graph matmul and the per-order projection slice (free leading-axis index).
    pk = L                                  # P_1
    p_prev = None                           # P_0 (all-ones) handled as a scalar
    for k in range(1, K + 1):
        if k >= 2:
            c1 = (2.0 * k - 1.0) / k        # pre-folded constants: muls, no divide
            c2 = (k - 1.0) / k
            if k == 2:
                nxt = (c1 * L) * pk - c2            # P_0 == ones -> scalar subtract
            else:
                nxt = (c1 * L) * pk - c2 * p_prev
            p_prev, pk = pk, nxt
        xk = jnp.dot(pk.astype(compute_dtype), x_mm,
                     preferred_element_type=jnp.float32)        # (TM, F_in)
        acc = acc + jnp.dot(xk.astype(compute_dtype),
                            w_ref[k].astype(compute_dtype),
                            preferred_element_type=jnp.float32)

    o_ref[0] = (acc + b_ref[...]).astype(o_ref.dtype)           # lane-dense store


def legendre_graph_conv(x, adj, weight, bias, K, *, compute_dtype=jnp.bfloat16):
    """x: (B, N, F_in), adj: (B, N, N), weight: (out, F_in*(K+1)), bias: (out,)."""
    B, N, F_in = x.shape
    out_f = weight.shape[0]
    assert weight.shape[1] == F_in * (K + 1)
    assert adj.shape == (B, N, N)

    out_pad = ((out_f + 127) // 128) * 128          # lane-dense output/weights
    TM = _pick_row_tile(N, F_in, out_pad)
    n_row_tiles = N // TM

    # D_hat^-1/2 from row degrees of A_hat = adj + I (needs full rows, so it is
    # a cheap one-pass reduction in the wrapper); passed in row- and col- views
    # so the kernel never transposes an (N, 1) vector.
    d_inv = lax.rsqrt(jnp.sum(adj, axis=2) + 1.0)   # (B, N)
    d_row = d_inv[:, :, None]                       # (B, N, 1)
    d_col = d_inv[:, None, :]                       # (B, 1, N)

    # (out, F_in*(K+1)) -> (K+1, F_in, out_pad): per-order slice is a free
    # leading-axis index; columns zero-padded to a multiple of 128 lanes.
    w_t = jnp.transpose(weight)                     # ((K+1)*F_in, out_f)
    w_t = jnp.pad(w_t, ((0, 0), (0, out_pad - out_f)))
    w_t = w_t.reshape(K + 1, F_in, out_pad)
    b_pad = jnp.pad(bias, (0, out_pad - out_f)).reshape(1, out_pad)

    kernel = functools.partial(_legendre_gcn_kernel, K=K, compute_dtype=compute_dtype)

    out = pl.pallas_call(
        kernel,
        out_shape=jax.ShapeDtypeStruct((B, N, out_pad), x.dtype),
        grid_spec=pltpu.PrefetchScalarGridSpec(
            num_scalar_prefetch=0,
            grid=(B, n_row_tiles),
            in_specs=[
                pl.BlockSpec((1, TM, N), lambda b, r: (b, r, 0)),       # adj stripe
                pl.BlockSpec((1, N, F_in), lambda b, r: (b, 0, 0)),     # x (resident)
                pl.BlockSpec((1, TM, 1), lambda b, r: (b, r, 0)),       # d_row stripe
                pl.BlockSpec((1, 1, N), lambda b, r: (b, 0, 0)),        # d_col
                pl.BlockSpec((K + 1, F_in, out_pad), lambda b, r: (0, 0, 0)),
                pl.BlockSpec((1, out_pad), lambda b, r: (0, 0)),
            ],
            out_specs=pl.BlockSpec((1, TM, out_pad), lambda b, r: (b, r, 0)),
        ),
        compiler_params=pltpu.CompilerParams(
            dimension_semantics=("parallel", "parallel")),
    )(adj, x, d_row, d_col, w_t, b_pad)

    return out[..., :out_f]


def _reference(x, adj, weight, bias, K):
    """Pure-JAX reference mirroring the PyTorch forward."""
    B, N, _ = adj.shape
    eye = jnp.eye(N, dtype=adj.dtype)[None]
    a_hat = adj + eye
    d = jnp.power(jnp.sum(a_hat, axis=2), -0.5)
    L = d[:, :, None] * a_hat * d[:, None, :]
    P = [jnp.ones_like(L), L]
    for k in range(2, K + 1):
        P.append(((2 * k - 1) * L * P[-1] - (k - 1) * P[-2]) / k)
    outs = [jnp.einsum("bij,bjf->bif", P[k], x) for k in range(K + 1)]
    cat = jnp.concatenate(outs, axis=2)
    return cat @ weight.T + bias


if __name__ == "__main__":
    B, N, F_in, out_f, K = 2, 16, 8, 8, 3

    key = jax.random.PRNGKey(0)
    k_adj, k_x, k_w, k_b = jax.random.split(key, 4)

    # symmetric 0/1 adjacency with empty diagonal (degrees >= 1 after +I)
    a = (jax.random.uniform(k_adj, (B, N, N)) > 0.5).astype(jnp.float32)
    adj = jnp.maximum(a, jnp.transpose(a, (0, 2, 1)))
    adj = adj * (1.0 - jnp.eye(N, dtype=jnp.float32)[None])

    x = jax.random.normal(k_x, (B, N, F_in), dtype=jnp.float32)

    # weight ~ N(0, 0.01) like init_weights(); small uniform bias
    weight = 0.01 * jax.random.normal(k_w, (out_f, F_in * (K + 1)), dtype=jnp.float32)
    bias = 0.1 * jax.random.uniform(k_b, (out_f,), dtype=jnp.float32)

    ref = _reference(x, adj, weight, bias, K)

    # f32 MXU path: bit-faithful to the module, tight tolerance.
    out_f32 = jax.block_until_ready(
        legendre_graph_conv(x, adj, weight, bias, K, compute_dtype=jnp.float32))
    assert out_f32.shape == (B, N, out_f)
    assert jnp.allclose(out_f32, ref, atol=1e-5, rtol=1e-5), "f32 kernel mismatch"

    # default bf16 MXU path (f32 accumulation): perf config, looser tolerance.
    out_bf16 = jax.block_until_ready(legendre_graph_conv(x, adj, weight, bias, K))
    assert out_bf16.shape == (B, N, out_f)
    assert jnp.allclose(out_bf16, ref, atol=1e-2, rtol=1e-2), "bf16 kernel mismatch"

    print("KERNEL_OK")
</pallas_src>

<mosaic_0001>
module attributes {stable_mosaic.version = 11 : i64} {
  func.func @_legendre_gcn_kernel(%arg0: i32, %arg1: i32, %arg2: memref<1x16x16xf32, #tpu.memory_space<vmem>>, %arg3: memref<1x16x8xf32, #tpu.memory_space<vmem>>, %arg4: memref<1x16x1xf32, #tpu.memory_space<vmem>>, %arg5: memref<1x1x16xf32, #tpu.memory_space<vmem>>, %arg6: memref<4x8x128xf32, #tpu.memory_space<vmem>>, %arg7: memref<1x128xf32, #tpu.memory_space<vmem>>, %arg8: memref<1x16x128xf32, #tpu.memory_space<vmem>>) attributes {dimension_semantics = [#tpu.dimension_semantics<parallel>, #tpu.dimension_semantics<parallel>], iteration_bounds = array<i64: 2, 1>, scalar_prefetch = 0 : i64, scratch_operands = 0 : i64, tpu.core_type = #tpu.core_type<tc>, window_params = [{transform_indices = @transform_0, window_bounds = array<i64: 1, 16, 16>}, {transform_indices = @transform_1, window_bounds = array<i64: 1, 16, 8>}, {transform_indices = @transform_2, window_bounds = array<i64: 1, 16, 1>}, {transform_indices = @transform_3, window_bounds = array<i64: 1, 1, 16>}, {pipeline_mode = #tpu.pipeline_mode<synchronous>, transform_indices = @transform_4, window_bounds = array<i64: 4, 8, 128>}, {pipeline_mode = #tpu.pipeline_mode<synchronous>, transform_indices = @transform_5, window_bounds = array<i64: 1, 128>}, {transform_indices = @transform_6, window_bounds = array<i64: 1, 16, 128>}]} {
    %c0 = arith.constant 0 : index
    %c0_0 = arith.constant 0 : index
    %c0_1 = arith.constant 0 : index
    %0 = vector.load %arg2[%c0, %c0_0, %c0_1] : memref<1x16x16xf32, #tpu.memory_space<vmem>>, vector<1x16x16xf32>
    %1 = vector.shape_cast %0 : vector<1x16x16xf32> to vector<16x16xf32>
    %c0_2 = arith.constant 0 : index
    %c0_3 = arith.constant 0 : index
    %c0_4 = arith.constant 0 : index
    %2 = vector.load %arg3[%c0_2, %c0_3, %c0_4] : memref<1x16x8xf32, #tpu.memory_space<vmem>>, vector<1x16x8xf32>
    %3 = vector.shape_cast %2 : vector<1x16x8xf32> to vector<16x8xf32>
    %c0_5 = arith.constant 0 : index
    %c0_6 = arith.constant 0 : index
    %c0_7 = arith.constant 0 : index
    %4 = vector.load %arg4[%c0_5, %c0_6, %c0_7] : memref<1x16x1xf32, #tpu.memory_space<vmem>>, vector<1x16x1xf32>
    %5 = vector.shape_cast %4 : vector<1x16x1xf32> to vector<16x1xf32>
    %c0_8 = arith.constant 0 : index
    %c0_9 = arith.constant 0 : index
    %c0_10 = arith.constant 0 : index
    %6 = vector.load %arg5[%c0_8, %c0_9, %c0_10] : memref<1x1x16xf32, #tpu.memory_space<vmem>>, vector<1x1x16xf32>
    %7 = vector.shape_cast %6 : vector<1x1x16xf32> to vector<1x16xf32>
    %c16_i32 = arith.constant 16 : i32
    %8 = arith.muli %arg1, %c16_i32 : i32
    %9 = tpu.iota {dimensions = array<i32: 0>} : vector<16x16xi32>
    %10 = vector.broadcast %8 : i32 to vector<16x16xi32>
    %11 = arith.addi %9, %10 : vector<16x16xi32>
    %12 = tpu.iota {dimensions = array<i32: 1>} : vector<16x16xi32>
    %13 = arith.cmpi eq, %11, %12 : vector<16x16xi32>
    %14 = arith.extui %13 : vector<16x16xi1> to vector<16x16xi32>
    %15 = arith.sitofp %14 : vector<16x16xi32> to vector<16x16xf32>
    %16 = arith.addf %1, %15 : vector<16x16xf32>
    %17 = vector.broadcast %5 : vector<16x1xf32> to vector<16x16xf32>
    %18 = arith.mulf %17, %16 : vector<16x16xf32>
    %19 = vector.broadcast %7 : vector<1x16xf32> to vector<16x16xf32>
    %20 = arith.mulf %18, %19 : vector<16x16xf32>
    %cst = arith.constant dense<0.000000e+00> : vector<8xf32>
    %21 = vector.multi_reduction <add>, %3, %cst [0] : vector<16x8xf32> to vector<8xf32>
    %22 = vector.shape_cast %21 : vector<8xf32> to vector<1x8xf32>
    %23 = vector.shape_cast %22 : vector<1x8xf32> to vector<1x8xf32>
    %24 = vector.broadcast %23 : vector<1x8xf32> to vector<16x8xf32>
    %c0_11 = arith.constant 0 : index
    %c0_12 = arith.constant 0 : index
    %c0_13 = arith.constant 0 : index
    %25 = vector.load %arg6[%c0_11, %c0_12, %c0_13] : memref<4x8x128xf32, #tpu.memory_space<vmem>>, vector<1x8x128xf32>
    %26 = vector.shape_cast %25 : vector<1x8x128xf32> to vector<8x128xf32>
    %cst_14 = arith.constant dense<0.000000e+00> : vector<16x128xf32>
    %27 = tpu.matmul %24, %26, %cst_14 {dimension_numbers = #tpu.dot_dimension_numbers<[1], [0], [0], [1], [0, 0, 1, 1], [], []>} : vector<16x8xf32>, vector<8x128xf32>, vector<16x128xf32> -> vector<16x128xf32>
    %cst_15 = arith.constant dense<0.000000e+00> : vector<16x8xf32>
    %28 = tpu.matmul %20, %3, %cst_15 {dimension_numbers = #tpu.dot_dimension_numbers<[1], [0], [0], [1], [0, 0, 1, 1], [], []>} : vector<16x16xf32>, vector<16x8xf32>, vector<16x8xf32> -> vector<16x8xf32>
    %c1 = arith.constant 1 : index
    %c0_16 = arith.constant 0 : index
    %c0_17 = arith.constant 0 : index
    %29 = vector.load %arg6[%c1, %c0_16, %c0_17] : memref<4x8x128xf32, #tpu.memory_space<vmem>>, vector<1x8x128xf32>
    %30 = vector.shape_cast %29 : vector<1x8x128xf32> to vector<8x128xf32>
    %cst_18 = arith.constant dense<0.000000e+00> : vector<16x128xf32>
    %31 = tpu.matmul %28, %30, %cst_18 {dimension_numbers = #tpu.dot_dimension_numbers<[1], [0], [0], [1], [0, 0, 1, 1], [], []>} : vector<16x8xf32>, vector<8x128xf32>, vector<16x128xf32> -> vector<16x128xf32>
    %32 = arith.addf %27, %31 : vector<16x128xf32>
    %cst_19 = arith.constant 1.500000e+00 : f32
    %33 = vector.broadcast %cst_19 : f32 to vector<16x16xf32>
    %34 = arith.mulf %33, %20 : vector<16x16xf32>
    %35 = arith.mulf %34, %20 : vector<16x16xf32>
    %cst_20 = arith.constant 5.000000e-01 : f32
    %36 = vector.broadcast %cst_20 : f32 to vector<16x16xf32>
    %37 = arith.subf %35, %36 : vector<16x16xf32>
    %cst_21 = arith.constant dense<0.000000e+00> : vector<16x8xf32>
    %38 = tpu.matmul %37, %3, %cst_21 {dimension_numbers = #tpu.dot_dimension_numbers<[1], [0], [0], [1], [0, 0, 1, 1], [], []>} : vector<16x16xf32>, vector<16x8xf32>, vector<16x8xf32> -> vector<16x8xf32>
    %c2 = arith.constant 2 : index
    %c0_22 = arith.constant 0 : index
    %c0_23 = arith.constant 0 : index
    %39 = vector.load %arg6[%c2, %c0_22, %c0_23] : memref<4x8x128xf32, #tpu.memory_space<vmem>>, vector<1x8x128xf32>
    %40 = vector.shape_cast %39 : vector<1x8x128xf32> to vector<8x128xf32>
    %cst_24 = arith.constant dense<0.000000e+00> : vector<16x128xf32>
    %41 = tpu.matmul %38, %40, %cst_24 {dimension_numbers = #tpu.dot_dimension_numbers<[1], [0], [0], [1], [0, 0, 1, 1], [], []>} : vector<16x8xf32>, vector<8x128xf32>, vector<16x128xf32> -> vector<16x128xf32>
    %42 = arith.addf %32, %41 : vector<16x128xf32>
    %cst_25 = arith.constant 1.66666663 : f32
    %43 = vector.broadcast %cst_25 : f32 to vector<16x16xf32>
    %44 = arith.mulf %43, %20 : vector<16x16xf32>
    %45 = arith.mulf %44, %37 : vector<16x16xf32>
    %cst_26 = arith.constant 0.666666686 : f32
    %46 = vector.broadcast %cst_26 : f32 to vector<16x16xf32>
    %47 = arith.mulf %46, %20 : vector<16x16xf32>
    %48 = arith.subf %45, %47 : vector<16x16xf32>
    %cst_27 = arith.constant dense<0.000000e+00> : vector<16x8xf32>
    %49 = tpu.matmul %48, %3, %cst_27 {dimension_numbers = #tpu.dot_dimension_numbers<[1], [0], [0], [1], [0, 0, 1, 1], [], []>} : vector<16x16xf32>, vector<16x8xf32>, vector<16x8xf32> -> vector<16x8xf32>
    %c3 = arith.constant 3 : index
    %c0_28 = arith.constant 0 : index
    %c0_29 = arith.constant 0 : index
    %50 = vector.load %arg6[%c3, %c0_28, %c0_29] : memref<4x8x128xf32, #tpu.memory_space<vmem>>, vector<1x8x128xf32>
    %51 = vector.shape_cast %50 : vector<1x8x128xf32> to vector<8x128xf32>
    %cst_30 = arith.constant dense<0.000000e+00> : vector<16x128xf32>
    %52 = tpu.matmul %49, %51, %cst_30 {dimension_numbers = #tpu.dot_dimension_numbers<[1], [0], [0], [1], [0, 0, 1, 1], [], []>} : vector<16x8xf32>, vector<8x128xf32>, vector<16x128xf32> -> vector<16x128xf32>
    %53 = arith.addf %42, %52 : vector<16x128xf32>
    %c0_31 = arith.constant 0 : index
    %c0_32 = arith.constant 0 : index
    %54 = vector.load %arg7[%c0_31, %c0_32] : memref<1x128xf32, #tpu.memory_space<vmem>>, vector<1x128xf32>
    %55 = vector.broadcast %54 : vector<1x128xf32> to vector<16x128xf32>
    %56 = arith.addf %53, %55 : vector<16x128xf32>
    %c0_33 = arith.constant 0 : index
    %c0_34 = arith.constant 0 : index
    %c0_35 = arith.constant 0 : index
    %57 = vector.load %arg8[%c0_33, %c0_34, %c0_35] : memref<1x16x128xf32, #tpu.memory_space<vmem>>, vector<1x16x128xf32>
    %58 = vector.shape_cast %57 : vector<1x16x128xf32> to vector<16x128xf32>
    %59 = vector.shape_cast %56 : vector<16x128xf32> to vector<1x16x128xf32>
    tpu.vector_store %arg8[%c0_33, %c0_34, %c0_35], %59 {strides = array<i32>} : memref<1x16x128xf32, #tpu.memory_space<vmem>>, vector<1x16x128xf32>,
    return
  }
  func.func @transform_0(%arg0: i32, %arg1: i32) -> (i32, i32, i32) {
    %c0_i32 = arith.constant 0 : i32
    %c0_i32_0 = arith.constant 0 : i32
    return %arg0, %arg1, %c0_i32 : i32, i32, i32
  }
  func.func @transform_1(%arg0: i32, %arg1: i32) -> (i32, i32, i32) {
    %c0_i32 = arith.constant 0 : i32
    %c0_i32_0 = arith.constant 0 : i32
    %c0_i32_1 = arith.constant 0 : i32
    return %arg0, %c0_i32, %c0_i32_0 : i32, i32, i32
  }
  func.func @transform_2(%arg0: i32, %arg1: i32) -> (i32, i32, i32) {
    %c0_i32 = arith.constant 0 : i32
    %c0_i32_0 = arith.constant 0 : i32
    return %arg0, %arg1, %c0_i32 : i32, i32, i32
  }
  func.func @transform_3(%arg0: i32, %arg1: i32) -> (i32, i32, i32) {
    %c0_i32 = arith.constant 0 : i32
    %c0_i32_0 = arith.constant 0 : i32
    %c0_i32_1 = arith.constant 0 : i32
    return %arg0, %c0_i32, %c0_i32_0 : i32, i32, i32
  }
  func.func @transform_4(%arg0: i32, %arg1: i32) -> (i32, i32, i32) {
    %c0_i32 = arith.constant 0 : i32
    %c0_i32_0 = arith.constant 0 : i32
    %c0_i32_1 = arith.constant 0 : i32
    %c0_i32_2 = arith.constant 0 : i32
    return %c0_i32, %c0_i32_0, %c0_i32_1 : i32, i32, i32
  }
  func.func @transform_5(%arg0: i32, %arg1: i32) -> (i32, i32) {
    %c0_i32 = arith.constant 0 : i32
    %c0_i32_0 = arith.constant 0 : i32
    %c0_i32_1 = arith.constant 0 : i32
    return %c0_i32, %c0_i32_0 : i32, i32
  }
  func.func @transform_6(%arg0: i32, %arg1: i32) -> (i32, i32, i32) {
    %c0_i32 = arith.constant 0 : i32
    %c0_i32_0 = arith.constant 0 : i32
    return %arg0, %arg1, %c0_i32 : i32, i32, i32
  }
}

</mosaic_0001>

<llo_original>
// kernel: tpu_custom_call.1
$region0: #{tpu_custom_call.1}
  #allocation0 [shape = 'u32[]', space=smem, size = 0x4, offset = 0x4, fixed_abs, tag = 'smem constant byte address 0x4 - core index']
  #allocation1 [shape = 'u32[72,128]{1,0:T(1,128)}', space=vmem, size = 0x9000, scoped, tag = 'internal scratch']
  %s0 = inlined_call_operand.vmem [shape: f32[2,16,16], index: 0, kind: input, shape index: {}]
  %s1 = inlined_call_operand.vmem [shape: f32[2,16,8], index: 1, kind: input, shape index: {}]
  %s2 = inlined_call_operand.vmem [shape: f32[2,16,1], index: 2, kind: input, shape index: {}]
  %s3 = inlined_call_operand.vmem [shape: f32[2,1,16], index: 3, kind: input, shape index: {}]
  %s4 = inlined_call_operand.vmem [shape: f32[4,8,128], index: 4, kind: input, shape index: {}]
  %s5 = inlined_call_operand.vmem [shape: f32[1,128], index: 5, kind: input, shape index: {}]
  %s6 = inlined_call_operand.hbm [shape: f32[2,16,128], index: 6, kind: output, shape index: {}]
  %s7 = sld [smem:[#allocation0]]
  $region57: #{tpu_custom_call.1} parent=0
    _
  %s9 = ssub.s32 1, %s7
  %s10 = scalar_select 0, %s9, %s7
  $region1: #{tpu_custom_call.1} parent=0
    #allocation2 [shape = 'u8[16384]{0}', space=vmem, size = 0x4000, scoped, tag = 'output window, operand 0']
    #allocation3 [shape = 's32[2]{0}', space=sflag, size = 0x8, scoped, tag = 'scoped memory for tpu_custom_call.1']
    %11 = vsyncpa [#allocation3], 0
    %s12 = scalar_lea.sflag [#allocation3], 1
    %13 = vsyncpa %s12, 0
    loop: start=0, step=1, limit=4
    $region2: #{tpu_custom_call.1} parent=1 // loop_pre_header
      _
    $region3: #{tpu_custom_call.1} parent=1 // loop_header
      %s15 = sphi 0, %s19
      %p16 = scmp.ge.s32.totalorder %s15, 4
      %s22 = sphi 0, %s34
      %s23 = sphi 0, %s30
      %s24 = sphi 0, %s22
      %s25 = sphi 0, %s23
      %s26 = sphi 0, %s24
      %s27 = sphi 0, %s25
      %s39 = sphi 0, %s41
      %s42 = sphi 0, %s39
      %s43 = sphi 0, %s42
      %s59 = sphi 0, %s43
      %s65 = sphi 0, %s67
      %s68 = sphi 0, %s65
      %s69 = sphi 0, %s68
      %s85 = sphi 0, %s69
      %s93 = sphi 0, %s95
      %s96 = sphi 0, %s93
      %s97 = sphi 0, %s96
      %s113 = sphi 0, %s97
      %s119 = sphi 0, %s121
      %s122 = sphi 0, %s119
      %s123 = sphi 0, %s122
      %s139 = sphi 0, %s123
      %s143 = sphi 0, %s143
      %s145 = sphi 0, %s143
      %s146 = sphi 0, %s145
      %s160 = sphi 0, %s146
      %s164 = sphi 0, %s164
      %s166 = sphi 0, %s164
      %s167 = sphi 0, %s166
      %s181 = sphi 0, %s167
      %s189 = sphi 0, %s191
      %s192 = sphi 0, %s189
      %s193 = sphi 0, %s192
      %s209 = sphi 0, %s193
    $region4: #{tpu_custom_call.1} parent=1 // loop_header_branch
      %18 = sbr.rel (%p16) target = $region8
    $region5: #{tpu_custom_call.1} parent=1 // loop_body
      %s20 = ssub.s32 %s15, 1
      %s21 = ssub.s32 %s15, 2
      %s28 = sadd.s32 1, %s23
      %p29 = scmp.ge.s32.totalorder %s28, 1
      %s30 = scalar_select %p29, 0, %s28
      %s31 = sadd.s32 1, %s22
      %s32 = scalar_select %p29, %s31, %s22
      %p33 = scmp.ge.s32.totalorder %s32, 2
      %s34 = scalar_select %p33, 0, %s32
      %s35 = ssub.s32 %s22, %s34
      %s36 = ssub.s32 %s23, %s30
      %s37 = sor.u32 %s35, %s36
      %p38 = scmp.eq.s32.totalorder %s37, 0
      %s40 = sadd.s32 %s39, 1
      %s41 = scalar_select %p38, %s39, %s40
      %p44 = pneg %p38
      %p45 = scmp.eq.s32.totalorder %s15, 1
      %p46 = por %p44, %p45
      %p47 = scmp.ne.s32.totalorder %s39, %s42
      %p48 = scmp.eq.s32.totalorder %s15, 0
      %p49 = por %p47, %p48
      %p50 = scmp.ne.s32.totalorder %s39, %s42
      %p51 = scmp.eq.s32.totalorder %s20, 1
      %p52 = por %p50, %p51
      %p53 = scmp.ne.s32.totalorder %s42, %s43
      %p54 = scmp.eq.s32.totalorder %s20, 0
      %p55 = por %p53, %p54
      %p56 = scmp.ne.s32.totalorder %s42, %s43
      %p57 = scmp.eq.s32.totalorder %s21, 1
      %p58 = por %p56, %p57
      %p60 = scmp.ne.s32.totalorder %s43, %s59
      %p61 = scmp.eq.s32.totalorder %s21, 0
      %p62 = por %p60, %p61
      %s63 = ssub.s32 %s22, %s34
      %p64 = scmp.eq.s32.totalorder %s63, 0
      %s66 = sadd.s32 %s65, 1
      %s67 = scalar_select %p64, %s65, %s66
      %p70 = pneg %p64
      %p71 = scmp.eq.s32.totalorder %s15, 1
      %p72 = por %p70, %p71
      %p73 = scmp.ne.s32.totalorder %s65, %s68
      %p74 = scmp.eq.s32.totalorder %s15, 0
      %p75 = por %p73, %p74
      %p76 = scmp.ne.s32.totalorder %s65, %s68
      %p77 = scmp.eq.s32.totalorder %s20, 1
      %p78 = por %p76, %p77
      %p79 = scmp.ne.s32.totalorder %s68, %s69
      %p80 = scmp.eq.s32.totalorder %s20, 0
      %p81 = por %p79, %p80
      %p82 = scmp.ne.s32.totalorder %s68, %s69
      %p83 = scmp.eq.s32.totalorder %s21, 1
      %p84 = por %p82, %p83
      %p86 = scmp.ne.s32.totalorder %s69, %s85
      %p87 = scmp.eq.s32.totalorder %s21, 0
      %p88 = por %p86, %p87
      %s89 = ssub.s32 %s22, %s34
      %s90 = ssub.s32 %s23, %s30
      %s91 = sor.u32 %s89, %s90
      %p92 = scmp.eq.s32.totalorder %s91, 0
      %s94 = sadd.s32 %s93, 1
      %s95 = scalar_select %p92, %s93, %s94
      %p98 = pneg %p92
      %p99 = scmp.eq.s32.totalorder %s15, 1
      %p100 = por %p98, %p99
      %p101 = scmp.ne.s32.totalorder %s93, %s96
      %p102 = scmp.eq.s32.totalorder %s15, 0
      %p103 = por %p101, %p102
      %p104 = scmp.ne.s32.totalorder %s93, %s96
      %p105 = scmp.eq.s32.totalorder %s20, 1
      %p106 = por %p104, %p105
      %p107 = scmp.ne.s32.totalorder %s96, %s97
      %p108 = scmp.eq.s32.totalorder %s20, 0
      %p109 = por %p107, %p108
      %p110 = scmp.ne.s32.totalorder %s96, %s97
      %p111 = scmp.eq.s32.totalorder %s21, 1
      %p112 = por %p110, %p111
      %p114 = scmp.ne.s32.totalorder %s97, %s113
      %p115 = scmp.eq.s32.totalorder %s21, 0
      %p116 = por %p114, %p115
      %s117 = ssub.s32 %s22, %s34
      %p118 = scmp.eq.s32.totalorder %s117, 0
      %s120 = sadd.s32 %s119, 1
      %s121 = scalar_select %p118, %s119, %s120
      %p124 = pneg %p118
      %p125 = scmp.eq.s32.totalorder %s15, 1
      %p126 = por %p124, %p125
      %p127 = scmp.ne.s32.totalorder %s119, %s122
      %p128 = scmp.eq.s32.totalorder %s15, 0
      %p129 = por %p127, %p128
      %p130 = scmp.ne.s32.totalorder %s119, %s122
      %p131 = scmp.eq.s32.totalorder %s20, 1
      %p132 = por %p130, %p131
      %p133 = scmp.ne.s32.totalorder %s122, %s123
      %p134 = scmp.eq.s32.totalorder %s20, 0
      %p135 = por %p133, %p134
      %p136 = scmp.ne.s32.totalorder %s122, %s123
      %p137 = scmp.eq.s32.totalorder %s21, 1
      %p138 = por %p136, %p137
      %p140 = scmp.ne.s32.totalorder %s123, %s139
      %p141 = scmp.eq.s32.totalorder %s21, 0
      %p142 = por %p140, %p141
      %s144 = sadd.s32 %s143, 1
      %p147 = scmp.eq.s32.totalorder %s15, 1
      %p148 = scmp.ne.s32.totalorder %s143, %s145
      %p149 = scmp.eq.s32.totalorder %s15, 0
      %p150 = por %p148, %p149
      %p151 = scmp.ne.s32.totalorder %s143, %s145
      %p152 = scmp.eq.s32.totalorder %s20, 1
      %p153 = por %p151, %p152
      %p154 = scmp.ne.s32.totalorder %s145, %s146
      %p155 = scmp.eq.s32.totalorder %s20, 0
      %p156 = por %p154, %p155
      %p157 = scmp.ne.s32.totalorder %s145, %s146
      %p158 = scmp.eq.s32.totalorder %s21, 1
      %p159 = por %p157, %p158
      %p161 = scmp.ne.s32.totalorder %s146, %s160
      %p162 = scmp.eq.s32.totalorder %s21, 0
      %p163 = por %p161, %p162
      %s165 = sadd.s32 %s164, 1
      %p168 = scmp.eq.s32.totalorder %s15, 1
      %p169 = scmp.ne.s32.totalorder %s164, %s166
      %p170 = scmp.eq.s32.totalorder %s15, 0
      %p171 = por %p169, %p170
      %p172 = scmp.ne.s32.totalorder %s164, %s166
      %p173 = scmp.eq.s32.totalorder %s20, 1
      %p174 = por %p172, %p173
      %p175 = scmp.ne.s32.totalorder %s166, %s167
      %p176 = scmp.eq.s32.totalorder %s20, 0
      %p177 = por %p175, %p176
      %p178 = scmp.ne.s32.totalorder %s166, %s167
      %p179 = scmp.eq.s32.totalorder %s21, 1
      %p180 = por %p178, %p179
      %p182 = scmp.ne.s32.totalorder %s167, %s181
      %p183 = scmp.eq.s32.totalorder %s21, 0
      %p184 = por %p182, %p183
      %s185 = ssub.s32 %s22, %s34
      %s186 = ssub.s32 %s23, %s30
      %s187 = sor.u32 %s185, %s186
      %p188 = scmp.eq.s32.totalorder %s187, 0
      %s190 = sadd.s32 %s189, 1
      %s191 = scalar_select %p188, %s189, %s190
      %p194 = pneg %p188
      %p195 = scmp.eq.s32.totalorder %s15, 1
      %p196 = por %p194, %p195
      %p197 = scmp.ne.s32.totalorder %s189, %s192
      %p198 = scmp.eq.s32.totalorder %s15, 0
      %p199 = por %p197, %p198
      %p200 = scmp.ne.s32.totalorder %s189, %s192
      %p201 = scmp.eq.s32.totalorder %s20, 1
      %p202 = por %p200, %p201
      %p203 = scmp.ne.s32.totalorder %s192, %s193
      %p204 = scmp.eq.s32.totalorder %s20, 0
      %p205 = por %p203, %p204
      %p206 = scmp.ne.s32.totalorder %s192, %s193
      %p207 = scmp.eq.s32.totalorder %s21, 1
      %p208 = por %p206, %p207
      %p210 = scmp.ne.s32.totalorder %s193, %s209
      %p211 = scmp.eq.s32.totalorder %s21, 0
      %p212 = por %p210, %p211
      %p213 = scmp.le.s32.totalorder 1, %s15
      %p214 = scmp.lt.s32.totalorder %s15, 3
      %p215 = pnand %p213, %p214
      %p216 = pneg %p215
      // Predicated region
      $region9: #{tpu_custom_call.1} parent=5 // pred_check
        _
      $region10: #{tpu_custom_call.1} parent=5 // pred_check_branch
        %218 = sbr.rel (%p215) target = $region12
      $region11: #{tpu_custom_call.1} parent=5 // pred_region
        %s219 = ssub.s32 %s15, 1
        // Predicated region
        $region13: #{tpu_custom_call.1} parent=11 // pred_check
          %p220 = pneg %p156
        $region14: #{tpu_custom_call.1} parent=11 // pred_check_branch
          %222 = sbr.rel (%p220) target = $region16
        $region15: #{tpu_custom_call.1} parent=11 // pred_region
          _
        $region16: #{tpu_custom_call.1} parent=11 // pred_fallthru
          _
        // Predicated region
        $region17: #{tpu_custom_call.1} parent=11 // pred_check
          %p223 = pneg %p177
        $region18: #{tpu_custom_call.1} parent=11 // pred_check_branch
          %225 = sbr.rel (%p223) target = $region20
        $region19: #{tpu_custom_call.1} parent=11 // pred_region
          _
        $region20: #{tpu_custom_call.1} parent=11 // pred_fallthru
          _
      $region12: #{tpu_custom_call.1} parent=5 // pred_fallthru
        _
      %p226 = scmp.lt.s32.totalorder %s15, 2
      // Predicated region
      $region21: #{tpu_custom_call.1} parent=5 // pred_check
        %p227 = pneg %p226
      $region22: #{tpu_custom_call.1} parent=5 // pred_check_branch
        %229 = sbr.rel (%p227) target = $region24
      $region23: #{tpu_custom_call.1} parent=5 // pred_region
        // Predicated region
        $region25: #{tpu_custom_call.1} parent=23 // pred_check
          %p230 = pneg %p49
        $region26: #{tpu_custom_call.1} parent=23 // pred_check_branch
          %232 = sbr.rel (%p230) target = $region28
        $region27: #{tpu_custom_call.1} parent=23 // pred_region
          %s233 = smul.u32 2, %s23
          %p234 = scmp.lt.s32.totalorder %s22, 1
          %s235 = scalar_select %p234, %s22, 1
          %p236 = scmp.lt.s32.totalorder %s233, 1
          %s237 = scalar_select %p236, %s233, 1
          %s238 = smul.addr %s235, 2
          %s239 = sadd.s32 %s237, %s238
          %s240 = smul.addr %s239, 8
          %s241 = scalar_lea.vmem %s0, %s240
          %s242 = smul.u32 2, %s23
        $region28: #{tpu_custom_call.1} parent=23 // pred_fallthru
          _
        // Predicated region
        $region29: #{tpu_custom_call.1} parent=23 // pred_check
          %p243 = pneg %p75
        $region30: #{tpu_custom_call.1} parent=23 // pred_check_branch
          %245 = sbr.rel (%p243) target = $region32
        $region31: #{tpu_custom_call.1} parent=23 // pred_region
          %p246 = scmp.lt.s32.totalorder %s22, 1
          %s247 = scalar_select %p246, %s22, 1
          %s248 = smul.addr %s247, 2
          %s249 = smul.addr %s248, 8
          %s250 = scalar_lea.vmem %s1, %s249
        $region32: #{tpu_custom_call.1} parent=23 // pred_fallthru
          _
        // Predicated region
        $region33: #{tpu_custom_call.1} parent=23 // pred_check
          %p251 = pneg %p103
        $region34: #{tpu_custom_call.1} parent=23 // pred_check_branch
          %253 = sbr.rel (%p251) target = $region36
        $region35: #{tpu_custom_call.1} parent=23 // pred_region
          %s254 = smul.u32 2, %s23
          %p255 = scmp.lt.s32.totalorder %s22, 1
          %s256 = scalar_select %p255, %s22, 1
          %p257 = scmp.lt.s32.totalorder %s254, 1
          %s258 = scalar_select %p257, %s254, 1
          %s259 = smul.addr %s256, 2
          %s260 = sadd.s32 %s258, %s259
          %s261 = smul.addr %s260, 8
          %s262 = scalar_lea.vmem %s2, %s261
          %s263 = smul.u32 2, %s23
        $region36: #{tpu_custom_call.1} parent=23 // pred_fallthru
          _
        // Predicated region
        $region37: #{tpu_custom_call.1} parent=23 // pred_check
          %p264 = pneg %p129
        $region38: #{tpu_custom_call.1} parent=23 // pred_check_branch
          %266 = sbr.rel (%p264) target = $region40
        $region39: #{tpu_custom_call.1} parent=23 // pred_region
          %p267 = scmp.lt.s32.totalorder %s22, 1
          %s268 = scalar_select %p267, %s22, 1
          %s269 = scalar_lea.vmem %s3, %s268
        $region40: #{tpu_custom_call.1} parent=23 // pred_fallthru
          _
      $region24: #{tpu_custom_call.1} parent=5 // pred_fallthru
        _
      %p270 = scmp.le.s32.totalorder 1, %s15
      %p271 = scmp.lt.s32.totalorder %s15, 3
      %p272 = pnand %p270, %p271
      %p273 = pneg %p272
      // Predicated region
      $region41: #{tpu_custom_call.1} parent=5 // pred_check
        _
      $region42: #{tpu_custom_call.1} parent=5 // pred_check_branch
        %275 = sbr.rel (%p272) target = $region44
      $region43: #{tpu_custom_call.1} parent=5 // pred_region
        %s276 = ssub.s32 %s15, 1
        %s277 = smul.u32 2, %s25
        %p278 = scmp.lt.s32.totalorder %s24, 1
        %s279 = scalar_select %p278, %s24, 1
        %p280 = scmp.lt.s32.totalorder %s277, 1
        %s281 = scalar_select %p280, %s277, 1
        %s282 = smul.addr %s279, 2
        %s283 = sadd.s32 %s281, %s282
        %s284 = smul.addr %s283, 8
        %s285 = scalar_lea.vmem %s0, %s284
        %p286 = pneg %p55
        %p287 = pneg %p52
        %p288 = scmp.lt.s32.totalorder %s24, 1
        %s289 = scalar_select %p288, %s24, 1
        %s290 = smul.addr %s289, 2
        %s291 = smul.addr %s290, 8
        %s292 = scalar_lea.vmem %s1, %s291
        %p293 = pneg %p81
        %p294 = pneg %p78
        %s295 = smul.u32 2, %s25
        %p296 = scmp.lt.s32.totalorder %s24, 1
        %s297 = scalar_select %p296, %s24, 1
        %p298 = scmp.lt.s32.totalorder %s295, 1
        %s299 = scalar_select %p298, %s295, 1
        %s300 = smul.addr %s297, 2
        %s301 = sadd.s32 %s299, %s300
        %s302 = smul.addr %s301, 8
        %s303 = scalar_lea.vmem %s2, %s302
        %p304 = pneg %p109
        %p305 = pneg %p106
        %p306 = scmp.lt.s32.totalorder %s24, 1
        %s307 = scalar_select %p306, %s24, 1
        %s308 = scalar_lea.vmem %s3, %s307
        %p309 = pneg %p135
        %p310 = pneg %p132
        %p311 = pneg %p156
        %p312 = pneg %p153
        %p313 = pneg %p177
        %p314 = pneg %p174
        %p315 = pneg %p205
        %p316 = pneg %p202
        %s317 = sand.u32 %s192, 1
        %s318 = scalar_lea.sflag [#allocation3], %s317
        %s319 = sand.u32 %s192, 1
        %s320 = smul.addr %s319, 16
        %s321 = scalar_lea.vmem [#allocation2], %s320
        %s322 = smul.u32 2, %s25
        %p323 = scmp.lt.s32.totalorder %s24, 1
        %s324 = scalar_select %p323, %s24, 1
        %p325 = scmp.lt.s32.totalorder %s322, 1
        %s326 = scalar_select %p325, %s322, 1
        %s327 = smul.addr %s324, 2
        %s328 = sadd.s32 %s326, %s327
        %s329 = smul.addr %s328, 8
        %s330 = scalar_lea.vmem %s0, %s329
        %s331 = smul.u32 2, %s25
        %p332 = scmp.lt.s32.totalorder %s24, 1
        %s333 = scalar_select %p332, %s24, 1
        %s334 = smul.addr %s333, 2
        %s335 = smul.addr %s334, 8
        %s336 = scalar_lea.vmem %s1, %s335
        %s337 = smul.u32 2, %s25
        %p338 = scmp.lt.s32.totalorder %s24, 1
        %s339 = scalar_select %p338, %s24, 1
        %p340 = scmp.lt.s32.totalorder %s337, 1
        %s341 = scalar_select %p340, %s337, 1
        %s342 = smul.addr %s339, 2
        %s343 = sadd.s32 %s341, %s342
        %s344 = smul.addr %s343, 8
        %s345 = scalar_lea.vmem %s2, %s344
        %s346 = smul.u32 2, %s25
        %p347 = scmp.lt.s32.totalorder %s24, 1
        %s348 = scalar_select %p347, %s24, 1
        %s349 = scalar_lea.vmem %s3, %s348
        %s350 = smul.u32 2, %s25
        %v351 = vld [vmem:[%s330] sm:$0xff]
        %v352 = vld [vmem:[%s330 + $0x8] sm:$0xff]
        %v353 = vld [vmem:[%s336] sm:$0xff]
        %v354 = vld [vmem:[%s336 + $0x8] sm:$0xff]
        %v355 = vld [vmem:[%s345] sm:$0xff]
        %v356 = vld [vmem:[%s345 + $0x8] sm:$0xff]
        %v357 = vld [vmem:[%s349] sm:$0x1]
        %s358 = smul.u32 %s25, 16
        %v359 = vlaneseq
        %v360 = vshrl.u32 %v359, 7
        %v361 = vadd.s32 %v360, 8
        %v362 = vstv %s358
        %v363 = vadd.s32 %v360, %v362
        %v364 = vadd.s32 %v361, %v362
        %v365 = vlaneseq
        %v366 = vand.u32 %v365, 127
        %vm367 = vcmp.eq.s32.totalorder %v363, %v366
        %vm368 = vcmp.eq.s32.totalorder %v364, %v366
        %v369 = vsel %vm367, 1, 0
        %v370 = vsel %vm368, 1, 0
        %v371 = vcvt.s32.f32 %v369
        %v372 = vcvt.s32.f32 %v370
        %v373 = vadd.f32 %v351, %v371
        %v374 = vadd.f32 %v352, %v372
        %376 = vset.pattern.permute.xlu0 0
        %377 = vperm.xlu0 %376, %v355
        %v378 = vpop.permute.xlu0 %377
        %381 = vset.pattern.permute.xlu0 0
        %382 = vperm.xlu0 %381, %v356
        %v383 = vpop.permute.xlu0 %382
        %v385 = vmul.f32 %v378, %v373
        %v386 = vmul.f32 %v383, %v374
        %v388 = vperm.slane %v357, 0
        %v390 = vmul.f32 %v385, %v388
        %v391 = vmul.f32 %v386, %v388
        %vm392 = vcmask 64512
        %v393 = vsel %vm392, %v353, 0.0
        %v394 = vsel %vm392, %v354, 0.0
        %v395 = vadd.f32 %v393, %v394
        %v396 = vrot.slane %v395, 4
        %v397 = vadd.f32 %v395, %v396
        %v398 = vrot.slane %v397, 2
        %v399 = vadd.f32 %v397, %v398
        %v400 = vrot.slane %v399, 1
        %v401 = vadd.f32 %v399, %v400
        %v402 = vld [vmem:[%s4] sm:$0xff]
        %vm403 = vcmask 130048
        %v405 = vsel %vm403, %v390, 0
        %v408 = vsel %vm403, %v391, 0
        %410 = vmatpush.msra.mxu0 0.0
        %411 = vmatpush.msra.mxu0 0.0
        %412 = vmatpush.msra.mxu0 0.0
        %413 = vmatpush.msra.mxu0 0.0
        %414 = vmatpush.msra.mxu0 0.0
        %415 = vmatpush.msra.mxu0 0.0
        %416 = vmatpush.msra.mxu0 0.0
        %417 = vmatpush.msra.mxu0 0.0
        %418 = vmatpush.msra.mxu0 0.0
        %419 = vmatpush.msra.mxu0 0.0
        %420 = vmatpush.msra.mxu0 0.0
        %421 = vmatpush.msra.mxu0 0.0
        %422 = vmatpush.msra.mxu0 0.0
        %423 = vmatpush.msra.mxu0 0.0
        %424 = vmatpush.msra.mxu0 %v354
        %425 = vmatpush.msra.mxu0 %v353
        %426 = vmatmul.f32.gmra.mxu0 %v405
        %v427 = vpop.f32.mrf.mxu0
        %v428 = vadd.f32 0.0, %v427
        %429 = vmatmul.f32.gmra.mxu0 %v408
        %v430 = vpop.f32.mrf.mxu0
        %v431 = vadd.f32 0.0, %v430
        %432 = vdwg.mxu0
        %s433 = scalar_lea.vmem %s4, 8
        %v434 = vld [vmem:[%s433] sm:$0xff]
        %v436 = vsel %vm392, %v428, 0
        %v439 = vsel %vm392, %v431, 0
        %441 = vmatpush.msra.mxu0 0.0
        %442 = vmatpush.msra.mxu0 0.0
        %443 = vmatpush.msra.mxu0 0.0
        %444 = vmatpush.msra.mxu0 0.0
        %445 = vmatpush.msra.mxu0 0.0
        %446 = vmatpush.msra.mxu0 0.0
        %447 = vmatpush.msra.mxu0 0.0
        %448 = vmatpush.msra.mxu0 0.0
        %449 = vmatpush.msra.mxu0 0.0
        %450 = vmatpush.msra.mxu0 0.0
        %451 = vmatpush.msra.mxu0 0.0
        %452 = vmatpush.msra.mxu0 0.0
        %453 = vmatpush.msra.mxu0 0.0
        %454 = vmatpush.msra.mxu0 0.0
        %455 = vmatpush.msra.mxu0 0.0
        %456 = vmatpush.msra.mxu0 %v434
        %457 = vmatmul.f32.gmra.mxu0 %v436
        %v458 = vpop.f32.mrf.mxu0
        %v459 = vadd.f32 0.0, %v458
        %460 = vmatmul.f32.gmra.mxu0 %v439
        %v461 = vpop.f32.mrf.mxu0
        %v462 = vadd.f32 0.0, %v461
        %463 = vdwg.mxu0
        %v465 = vsel %vm392, %v401, 0
        %467 = vmatpush.msra.mxu0 0.0
        %468 = vmatpush.msra.mxu0 0.0
        %469 = vmatpush.msra.mxu0 0.0
        %470 = vmatpush.msra.mxu0 0.0
        %471 = vmatpush.msra.mxu0 0.0
        %472 = vmatpush.msra.mxu0 0.0
        %473 = vmatpush.msra.mxu0 0.0
        %474 = vmatpush.msra.mxu0 0.0
        %475 = vmatpush.msra.mxu0 0.0
        %476 = vmatpush.msra.mxu0 0.0
        %477 = vmatpush.msra.mxu0 0.0
        %478 = vmatpush.msra.mxu0 0.0
        %479 = vmatpush.msra.mxu0 0.0
        %480 = vmatpush.msra.mxu0 0.0
        %481 = vmatpush.msra.mxu0 0.0
        %482 = vmatpush.msra.mxu0 %v402
        %483 = vmatmul.f32.gmra.mxu0 %v465
        %v484 = vpop.f32.mrf.mxu0
        %v485 = vadd.f32 %v459, %v484
        %486 = vmatmul.f32.gmra.mxu0 %v465
        %v487 = vpop.f32.mrf.mxu0
        %v488 = vadd.f32 %v462, %v487
        %489 = vdwg.mxu0
        %v490 = vmul.f32 %v390, 1.5
        %v491 = vmul.f32 %v391, 1.5
        %v492 = vmul.f32 %v490, %v390
        %v493 = vmul.f32 %v491, %v391
        %v494 = vsub.f32 %v492, 0.5
        %v495 = vsub.f32 %v493, 0.5
        %v497 = vsel %vm403, %v494, 0
        %v500 = vsel %vm403, %v495, 0
        %502 = vmatpush.msra.mxu0 0.0
        %503 = vmatpush.msra.mxu0 0.0
        %504 = vmatpush.msra.mxu0 0.0
        %505 = vmatpush.msra.mxu0 0.0
        %506 = vmatpush.msra.mxu0 0.0
        %507 = vmatpush.msra.mxu0 0.0
        %508 = vmatpush.msra.mxu0 0.0
        %509 = vmatpush.msra.mxu0 0.0
        %510 = vmatpush.msra.mxu0 0.0
        %511 = vmatpush.msra.mxu0 0.0
        %512 = vmatpush.msra.mxu0 0.0
        %513 = vmatpush.msra.mxu0 0.0
        %514 = vmatpush.msra.mxu0 0.0
        %515 = vmatpush.msra.mxu0 0.0
        %516 = vmatpush.msra.mxu0 %v354
        %517 = vmatpush.msra.mxu0 %v353
        %518 = vmatmul.f32.gmra.mxu0 %v497
        %v519 = vpop.f32.mrf.mxu0
        %v520 = vadd.f32 0.0, %v519
        %521 = vmatmul.f32.gmra.mxu0 %v500
        %v522 = vpop.f32.mrf.mxu0
        %v523 = vadd.f32 0.0, %v522
        %524 = vdwg.mxu0
        %s525 = scalar_lea.vmem %s4, 16
        %v526 = vld [vmem:[%s525] sm:$0xff]
        %v528 = vsel %vm392, %v520, 0
        %v531 = vsel %vm392, %v523, 0
        %533 = vmatpush.msra.mxu0 0.0
        %534 = vmatpush.msra.mxu0 0.0
        %535 = vmatpush.msra.mxu0 0.0
        %536 = vmatpush.msra.mxu0 0.0
        %537 = vmatpush.msra.mxu0 0.0
        %538 = vmatpush.msra.mxu0 0.0
        %539 = vmatpush.msra.mxu0 0.0
        %540 = vmatpush.msra.mxu0 0.0
        %541 = vmatpush.msra.mxu0 0.0
        %542 = vmatpush.msra.mxu0 0.0
        %543 = vmatpush.msra.mxu0 0.0
        %544 = vmatpush.msra.mxu0 0.0
        %545 = vmatpush.msra.mxu0 0.0
        %546 = vmatpush.msra.mxu0 0.0
        %547 = vmatpush.msra.mxu0 0.0
        %548 = vmatpush.msra.mxu0 %v526
        %549 = vmatmul.f32.gmra.mxu0 %v528
        %v550 = vpop.f32.mrf.mxu0
        %v551 = vadd.f32 0.0, %v550
        %552 = vmatmul.f32.gmra.mxu0 %v531
        %v553 = vpop.f32.mrf.mxu0
        %v554 = vadd.f32 0.0, %v553
        %555 = vdwg.mxu0
        %v556 = vadd.f32 %v485, %v551
        %v557 = vadd.f32 %v488, %v554
        %v558 = vmul.f32 %v390, 1.6666666
        %v559 = vmul.f32 %v391, 1.6666666
        %v560 = vmul.f32 %v558, %v494
        %v561 = vmul.f32 %v559, %v495
        %v562 = vmul.f32 %v390, 0.6666667
        %v563 = vmul.f32 %v391, 0.6666667
        %v564 = vsub.f32 %v560, %v562
        %v565 = vsub.f32 %v561, %v563
        %v567 = vsel %vm403, %v564, 0
        %v570 = vsel %vm403, %v565, 0
        %572 = vmatpush.msra.mxu0 0.0
        %573 = vmatpush.msra.mxu0 0.0
        %574 = vmatpush.msra.mxu0 0.0
        %575 = vmatpush.msra.mxu0 0.0
        %576 = vmatpush.msra.mxu0 0.0
        %577 = vmatpush.msra.mxu0 0.0
        %578 = vmatpush.msra.mxu0 0.0
        %579 = vmatpush.msra.mxu0 0.0
        %580 = vmatpush.msra.mxu0 0.0
        %581 = vmatpush.msra.mxu0 0.0
        %582 = vmatpush.msra.mxu0 0.0
        %583 = vmatpush.msra.mxu0 0.0
        %584 = vmatpush.msra.mxu0 0.0
        %585 = vmatpush.msra.mxu0 0.0
        %586 = vmatpush.msra.mxu0 %v354
        %587 = vmatpush.msra.mxu0 %v353
        %588 = vmatmul.f32.gmra.mxu0 %v567
        %v589 = vpop.f32.mrf.mxu0
        %v590 = vadd.f32 0.0, %v589
        %591 = vmatmul.f32.gmra.mxu0 %v570
        %v592 = vpop.f32.mrf.mxu0
        %v593 = vadd.f32 0.0, %v592
        %594 = vdwg.mxu0
        %s595 = scalar_lea.vmem %s4, 24
        %v596 = vld [vmem:[%s595] sm:$0xff]
        %v598 = vsel %vm392, %v590, 0
        %v601 = vsel %vm392, %v593, 0
        %603 = vmatpush.msra.mxu0 0.0
        %604 = vmatpush.msra.mxu0 0.0
        %605 = vmatpush.msra.mxu0 0.0
        %606 = vmatpush.msra.mxu0 0.0
        %607 = vmatpush.msra.mxu0 0.0
        %608 = vmatpush.msra.mxu0 0.0
        %609 = vmatpush.msra.mxu0 0.0
        %610 = vmatpush.msra.mxu0 0.0
        %611 = vmatpush.msra.mxu0 0.0
        %612 = vmatpush.msra.mxu0 0.0
        %613 = vmatpush.msra.mxu0 0.0
        %614 = vmatpush.msra.mxu0 0.0
        %615 = vmatpush.msra.mxu0 0.0
        %616 = vmatpush.msra.mxu0 0.0
        %617 = vmatpush.msra.mxu0 0.0
        %618 = vmatpush.msra.mxu0 %v596
        %619 = vmatmul.f32.gmra.mxu0 %v598
        %v620 = vpop.f32.mrf.mxu0
        %v621 = vadd.f32 0.0, %v620
        %622 = vmatmul.f32.gmra.mxu0 %v601
        %v623 = vpop.f32.mrf.mxu0
        %v624 = vadd.f32 0.0, %v623
        %625 = vdwg.mxu0
        %v626 = vadd.f32 %v556, %v621
        %v627 = vadd.f32 %v557, %v624
        %v628 = vld [vmem:[%s5] sm:$0x1]
        %v630 = vperm.slane %v628, 0
        %v632 = vadd.f32 %v626, %v630
        %v633 = vadd.f32 %v627, %v630
        %634 = vst [vmem:[%s321] sm:$0xff] %v632
        %635 = vst [vmem:[%s321 + $0x8] sm:$0xff] %v633
        %s636 = sand.u32 %s192, 1
        %s637 = scalar_lea.sflag [#allocation3], %s636
        %s638 = sand.u32 %s192, 1
        %s639 = smul.addr %s638, 16
        %s640 = scalar_lea.vmem [#allocation2], %s639
        // Predicated region
        $region45: #{tpu_custom_call.1} parent=43 // pred_check
          %p641 = pneg %p202
        $region46: #{tpu_custom_call.1} parent=43 // pred_check_branch
          %643 = sbr.rel (%p641) target = $region48
        $region47: #{tpu_custom_call.1} parent=43 // pred_region
          %s644 = smul.u32 2, %s25
          %646 = vsyncadd %s637, 0
          %s647 = smul.addr %s24, 2
          %s648 = sadd.s32 %s644, %s647
          %s649 = smul.addr %s648, 8
          %s650 = scalar_lea.hbm %s6, %s649
          %s651 = sshll.u32 %s640, 4
          %s652 = int_to_ptr.vmem [resolvable:$true] %s651
          %s653 = sshll.u32 %s650, 4
          %s654 = int_to_ptr.hbm [resolvable:$true] %s653
          %659 = dma.vmem_to_hbm [thread:$0]  %s652, 256, %s654, %s637, 128, 128, 8
        $region48: #{tpu_custom_call.1} parent=43 // pred_fallthru
          _
      $region44: #{tpu_custom_call.1} parent=5 // pred_fallthru
        _
      %p660 = scmp.le.s32.totalorder 2, %s15
      // Predicated region
      $region49: #{tpu_custom_call.1} parent=5 // pred_check
        %p661 = pneg %p660
      $region50: #{tpu_custom_call.1} parent=5 // pred_check_branch
        %663 = sbr.rel (%p661) target = $region52
      $region51: #{tpu_custom_call.1} parent=5 // pred_region
        %s664 = ssub.s32 %s15, 2
        // Predicated region
        $region53: #{tpu_custom_call.1} parent=51 // pred_check
          %p665 = pneg %p208
        $region54: #{tpu_custom_call.1} parent=51 // pred_check_branch
          %667 = sbr.rel (%p665) target = $region56
        $region55: #{tpu_custom_call.1} parent=51 // pred_region
          %s668 = sand.u32 %s193, 1
          %s669 = scalar_lea.sflag [#allocation3], %s668
          %s670 = sand.u32 %s193, 1
          %s671 = smul.addr %s670, 16
          %s672 = scalar_lea.vmem [#allocation2], %s671
          %674 = dma.done %s669, 256
        $region56: #{tpu_custom_call.1} parent=51 // pred_fallthru
          _
      $region52: #{tpu_custom_call.1} parent=5 // pred_fallthru
        _
    $region6: #{tpu_custom_call.1} parent=1 // loop_footer
      %s19 = sadd.s32 1, %s15
    $region7: #{tpu_custom_call.1} parent=1 // loop_footer_branch
      %14 = sbr.rel target = $region3
    $region8: #{tpu_custom_call.1} parent=1 // loop_exit
      _
    %675 = vsyncpa [#allocation3], 1
    %s676 = scalar_lea.sflag [#allocation3], 1
    %677 = vsyncpa %s676, 1

</llo_original>
